<compile_context>
chip_gen: v6e
topology: v6e:2x2x1
jax: 0.10.0
libtpu: 0.0.40
codegen_flags: <defaults>
</compile_context>

<pallas_src>
import math
from functools import partial

import jax
import jax.numpy as jnp
from jax import lax
from jax.experimental import pallas as pl


def _attn_kernel(B, S, D, dropout_p, xq_ref, xk_ref, wqt_ref, wkt_ref, bits_ref, o_ref):
    """Single invocation; all operands are whole arrays resident in VMEM.

    xq_ref, xk_ref : (B*S, D)  bf16   batch flattened into the M dim of the projections
    wqt_ref        : (D, D)    bf16   = (Wq / sqrt(D)).T   (scale hoisted into the weight)
    wkt_ref        : (D, D)    bf16   = Wk.T
    bits_ref       : (B, S, S) uint32 host-generated dropout randomness
    o_ref          : (B, S, S) f32
    """
    # Projections: one (B*S, D) x (D, D) MXU matmul each, bf16 in / f32 accumulate.
    q_all = jnp.dot(xq_ref[...], wqt_ref[...], preferred_element_type=jnp.float32)
    k_all = jnp.dot(xk_ref[...], wkt_ref[...], preferred_element_type=jnp.float32)

    if dropout_p > 0.0:
        # keep iff bits >= p * 2^32  ->  P(keep) = 1 - p  (single integer compare per elem)
        thresh = jnp.uint32(min(int(round(dropout_p * (1 << 32))), (1 << 32) - 1))
        inv_keep = 1.0 / (1.0 - dropout_p)

    for b in range(B):  # B is tiny; static unroll, all rank-2 MXU matmuls
        q_b = q_all[b * S:(b + 1) * S, :].astype(jnp.bfloat16)   # (S, D)
        k_b = k_all[b * S:(b + 1) * S, :].astype(jnp.bfloat16)   # (S, D)

        # logits = q @ k.T without materializing a transpose (contract last dims of both);
        # the 1/sqrt(D) scale is already folded into Wq.
        qk = lax.dot_general(q_b, k_b, (((1,), (1,)), ((), ())),
                             preferred_element_type=jnp.float32)  # (S, S)

        # softmax along last axis (f32)
        m = jnp.max(qk, axis=-1, keepdims=True)
        e = jnp.exp(qk - m)
        attn = e / jnp.sum(e, axis=-1, keepdims=True)

        # torch.dropout(attn, p, train=True)
        if dropout_p > 0.0:
            keep = bits_ref[b] >= thresh
            attn = jnp.where(keep, attn * inv_keep, 0.0)

        # output = k @ dropout(attn)   (S, D) @ (S, S)  -- valid because D == S
        o_ref[b] = jnp.dot(k_b, attn.astype(jnp.bfloat16),
                           preferred_element_type=jnp.float32)


def model_forward(xq, xk, xv, attn_mask, wq, wk, wv, *, nb_head, dropout_p, seed=0):
    # xv, attn_mask, wv are dead code in the reference forward; kept for interface parity.
    del xv, attn_mask, wv, nb_head
    B, S, D = xq.shape
    assert D == S, "torch.matmul(k, attn) in the reference requires dim == seq_len"

    inv_sqrt_d = 1.0 / math.sqrt(D)
    # Pre-transpose weights on the host (free) and fold 1/sqrt(D) into Wq;
    # bf16 operands for the MXU, f32 accumulation inside the kernel.
    wqt = (wq.T * inv_sqrt_d).astype(jnp.bfloat16)
    wkt = wk.T.astype(jnp.bfloat16)
    xq2 = xq.reshape(B * S, D).astype(jnp.bfloat16)
    xk2 = xk.reshape(B * S, D).astype(jnp.bfloat16)

    # Host-side randomness for dropout (works on TPU and on the CPU/interpret path).
    bits = jax.random.bits(jax.random.PRNGKey(seed), (B, S, S), dtype=jnp.uint32)

    return pl.pallas_call(
        partial(_attn_kernel, B, S, D, float(dropout_p)),
        out_shape=jax.ShapeDtypeStruct((B, S, S), jnp.float32),
    )(xq2, xk2, wqt, wkt, bits)


if __name__ == "__main__":
    B, S, D, nb_head, dropout_p = 2, 32, 32, 4, 0.1

    key = jax.random.PRNGKey(0)
    k1, k2, k3, k4, k5, k6, k7 = jax.random.split(key, 7)
    xq = jax.random.normal(k1, (B, S, D), jnp.float32)
    xk = jax.random.normal(k2, (B, S, D), jnp.float32)
    xv = jax.random.normal(k3, (B, S, D), jnp.float32)
    attn_mask = jax.random.normal(k4, (B, S, D), jnp.float32)

    # deterministic Linear weights (torch default init range: U(-1/sqrt(in), 1/sqrt(in)))
    bound = 1.0 / math.sqrt(D)
    wq = jax.random.uniform(k5, (D, D), jnp.float32, -bound, bound)
    wk = jax.random.uniform(k6, (D, D), jnp.float32, -bound, bound)
    wv = jax.random.uniform(k7, (D, D), jnp.float32, -bound, bound)

    # Sanity check (dropout disabled) against a pure-JAX reference that uses the same
    # bf16-operand / f32-accumulate recipe as the kernel.
    out_nodrop = model_forward(xq, xk, xv, attn_mask, wq, wk, wv,
                               nb_head=nb_head, dropout_p=0.0)
    wqt_ref = (wq.T / math.sqrt(D)).astype(jnp.bfloat16)
    wkt_ref = wk.T.astype(jnp.bfloat16)
    q_ref = jnp.einsum('bsd,de->bse', xq.astype(jnp.bfloat16), wqt_ref,
                       preferred_element_type=jnp.float32).astype(jnp.bfloat16)
    k_ref = jnp.einsum('bsd,de->bse', xk.astype(jnp.bfloat16), wkt_ref,
                       preferred_element_type=jnp.float32).astype(jnp.bfloat16)
    qk_ref = jnp.einsum('bqd,bkd->bqk', q_ref, k_ref, preferred_element_type=jnp.float32)
    attn_ref = jax.nn.softmax(qk_ref, axis=-1)
    ref = jnp.einsum('bid,bdj->bij', k_ref, attn_ref.astype(jnp.bfloat16),
                     preferred_element_type=jnp.float32)
    assert jnp.allclose(out_nodrop, ref, atol=2e-2, rtol=2e-2), "mismatch vs reference"

    # Full forward with dropout (train=True), as in the torch module.
    out = model_forward(xq, xk, xv, attn_mask, wq, wk, wv,
                        nb_head=nb_head, dropout_p=dropout_p, seed=42)
    jax.block_until_ready(out)
    print("KERNEL_OK")
</pallas_src>

<mosaic_0001>
module attributes {stable_mosaic.version = 11 : i64} {
  func.func @_attn_kernel(%arg0: memref<64x32xbf16, #tpu.memory_space<vmem>>, %arg1: memref<64x32xbf16, #tpu.memory_space<vmem>>, %arg2: memref<32x32xbf16, #tpu.memory_space<vmem>>, %arg3: memref<32x32xbf16, #tpu.memory_space<vmem>>, %arg4: memref<2x32x32xi32, #tpu.memory_space<vmem>>, %arg5: memref<2x32x32xf32, #tpu.memory_space<vmem>>) attributes {dimension_semantics = [], scalar_prefetch = 0 : i64, scratch_operands = 0 : i64, tpu.core_type = #tpu.core_type<tc>} {
    %c0 = arith.constant 0 : index
    %c0_0 = arith.constant 0 : index
    %0 = vector.load %arg0[%c0, %c0_0] : memref<64x32xbf16, #tpu.memory_space<vmem>>, vector<64x32xbf16>
    %c0_1 = arith.constant 0 : index
    %c0_2 = arith.constant 0 : index
    %1 = vector.load %arg2[%c0_1, %c0_2] : memref<32x32xbf16, #tpu.memory_space<vmem>>, vector<32x32xbf16>
    %cst = arith.constant dense<0.000000e+00> : vector<64x32xf32>
    %2 = tpu.matmul %0, %1, %cst {dimension_numbers = #tpu.dot_dimension_numbers<[1], [0], [0], [1], [0, 0, 1, 1], [], []>} : vector<64x32xbf16>, vector<32x32xbf16>, vector<64x32xf32> -> vector<64x32xf32>
    %c0_3 = arith.constant 0 : index
    %c0_4 = arith.constant 0 : index
    %3 = vector.load %arg1[%c0_3, %c0_4] : memref<64x32xbf16, #tpu.memory_space<vmem>>, vector<64x32xbf16>
    %c0_5 = arith.constant 0 : index
    %c0_6 = arith.constant 0 : index
    %4 = vector.load %arg3[%c0_5, %c0_6] : memref<32x32xbf16, #tpu.memory_space<vmem>>, vector<32x32xbf16>
    %cst_7 = arith.constant dense<0.000000e+00> : vector<64x32xf32>
    %5 = tpu.matmul %3, %4, %cst_7 {dimension_numbers = #tpu.dot_dimension_numbers<[1], [0], [0], [1], [0, 0, 1, 1], [], []>} : vector<64x32xbf16>, vector<32x32xbf16>, vector<64x32xf32> -> vector<64x32xf32>
    %6 = vector.extract_strided_slice %2 {offsets = [0, 0], sizes = [32, 32], strides = [1, 1]} : vector<64x32xf32> to vector<32x32xf32>
    %7 = arith.truncf %6 : vector<32x32xf32> to vector<32x32xbf16>
    %8 = vector.extract_strided_slice %5 {offsets = [0, 0], sizes = [32, 32], strides = [1, 1]} : vector<64x32xf32> to vector<32x32xf32>
    %9 = arith.truncf %8 : vector<32x32xf32> to vector<32x32xbf16>
    %cst_8 = arith.constant dense<0.000000e+00> : vector<32x32xf32>
    %10 = tpu.matmul %7, %9, %cst_8 {dimension_numbers = #tpu.dot_dimension_numbers<[1], [1], [0], [0], [0, 0, 1, 0], [], []>} : vector<32x32xbf16>, vector<32x32xbf16>, vector<32x32xf32> -> vector<32x32xf32>
    %cst_9 = arith.constant dense<0xFF800000> : vector<32xf32>
    %11 = vector.multi_reduction <maximumf>, %10, %cst_9 [1] : vector<32x32xf32> to vector<32xf32>
    %12 = vector.shape_cast %11 : vector<32xf32> to vector<32x1xf32>
    %13 = vector.broadcast %12 : vector<32x1xf32> to vector<32x32xf32>
    %14 = arith.subf %10, %13 : vector<32x32xf32>
    %15 = math.exp %14 : vector<32x32xf32>
    %cst_10 = arith.constant dense<0.000000e+00> : vector<32xf32>
    %16 = vector.multi_reduction <add>, %15, %cst_10 [1] : vector<32x32xf32> to vector<32xf32>
    %17 = vector.shape_cast %16 : vector<32xf32> to vector<32x1xf32>
    %18 = vector.broadcast %17 : vector<32x1xf32> to vector<32x32xf32>
    %19 = arith.divf %15, %18 : vector<32x32xf32>
    %20 = arith.truncf %19 : vector<32x32xf32> to vector<32x32xbf16>
    %cst_11 = arith.constant dense<0.000000e+00> : vector<32x32xf32>
    %21 = tpu.matmul %9, %20, %cst_11 {dimension_numbers = #tpu.dot_dimension_numbers<[1], [0], [0], [1], [0, 0, 1, 1], [], []>} : vector<32x32xbf16>, vector<32x32xbf16>, vector<32x32xf32> -> vector<32x32xf32>
    %c0_12 = arith.constant 0 : index
    %c0_13 = arith.constant 0 : index
    %c0_14 = arith.constant 0 : index
    %22 = vector.load %arg5[%c0_12, %c0_13, %c0_14] : memref<2x32x32xf32, #tpu.memory_space<vmem>>, vector<1x32x32xf32>
    %23 = vector.shape_cast %22 : vector<1x32x32xf32> to vector<32x32xf32>
    %24 = vector.shape_cast %21 : vector<32x32xf32> to vector<1x32x32xf32>
    tpu.vector_store %arg5[%c0_12, %c0_13, %c0_14], %24 {strides = array<i32>} : memref<2x32x32xf32, #tpu.memory_space<vmem>>, vector<1x32x32xf32>,
    %25 = vector.extract_strided_slice %2 {offsets = [32, 0], sizes = [32, 32], strides = [1, 1]} : vector<64x32xf32> to vector<32x32xf32>
    %26 = arith.truncf %25 : vector<32x32xf32> to vector<32x32xbf16>
    %27 = vector.extract_strided_slice %5 {offsets = [32, 0], sizes = [32, 32], strides = [1, 1]} : vector<64x32xf32> to vector<32x32xf32>
    %28 = arith.truncf %27 : vector<32x32xf32> to vector<32x32xbf16>
    %cst_15 = arith.constant dense<0.000000e+00> : vector<32x32xf32>
    %29 = tpu.matmul %26, %28, %cst_15 {dimension_numbers = #tpu.dot_dimension_numbers<[1], [1], [0], [0], [0, 0, 1, 0], [], []>} : vector<32x32xbf16>, vector<32x32xbf16>, vector<32x32xf32> -> vector<32x32xf32>
    %cst_16 = arith.constant dense<0xFF800000> : vector<32xf32>
    %30 = vector.multi_reduction <maximumf>, %29, %cst_16 [1] : vector<32x32xf32> to vector<32xf32>
    %31 = vector.shape_cast %30 : vector<32xf32> to vector<32x1xf32>
    %32 = vector.broadcast %31 : vector<32x1xf32> to vector<32x32xf32>
    %33 = arith.subf %29, %32 : vector<32x32xf32>
    %34 = math.exp %33 : vector<32x32xf32>
    %cst_17 = arith.constant dense<0.000000e+00> : vector<32xf32>
    %35 = vector.multi_reduction <add>, %34, %cst_17 [1] : vector<32x32xf32> to vector<32xf32>
    %36 = vector.shape_cast %35 : vector<32xf32> to vector<32x1xf32>
    %37 = vector.broadcast %36 : vector<32x1xf32> to vector<32x32xf32>
    %38 = arith.divf %34, %37 : vector<32x32xf32>
    %39 = arith.truncf %38 : vector<32x32xf32> to vector<32x32xbf16>
    %cst_18 = arith.constant dense<0.000000e+00> : vector<32x32xf32>
    %40 = tpu.matmul %28, %39, %cst_18 {dimension_numbers = #tpu.dot_dimension_numbers<[1], [0], [0], [1], [0, 0, 1, 1], [], []>} : vector<32x32xbf16>, vector<32x32xbf16>, vector<32x32xf32> -> vector<32x32xf32>
    %c1 = arith.constant 1 : index
    %c0_19 = arith.constant 0 : index
    %c0_20 = arith.constant 0 : index
    %41 = vector.load %arg5[%c1, %c0_19, %c0_20] : memref<2x32x32xf32, #tpu.memory_space<vmem>>, vector<1x32x32xf32>
    %42 = vector.shape_cast %41 : vector<1x32x32xf32> to vector<32x32xf32>
    %43 = vector.shape_cast %40 : vector<32x32xf32> to vector<1x32x32xf32>
    tpu.vector_store %arg5[%c1, %c0_19, %c0_20], %43 {strides = array<i32>} : memref<2x32x32xf32, #tpu.memory_space<vmem>>, vector<1x32x32xf32>,
    return
  }
}

</mosaic_0001>

<llo_original>
// kernel: tpu_custom_call.1
$region0: #{tpu_custom_call.1}
  #allocation0 [shape = 'u32[]', space=smem, size = 0x4, offset = 0x4, fixed_abs, tag = 'smem constant byte address 0x4 - core index']
  #allocation1 [shape = 'u32[144,128]{1,0:T(1,128)}', space=vmem, size = 0x12000, scoped, tag = 'internal scratch']
  %s0 = inlined_call_operand.vmem [shape: bf16[64,32], index: 0, kind: input, shape index: {}]
  %s1 = inlined_call_operand.vmem [shape: bf16[64,32], index: 1, kind: input, shape index: {}]
  %s2 = inlined_call_operand.vmem [shape: bf16[32,32], index: 2, kind: input, shape index: {}]
  %s3 = inlined_call_operand.vmem [shape: bf16[32,32], index: 3, kind: input, shape index: {}]
  %s4 = inlined_call_operand.vmem [shape: u32[2,32,32], index: 4, kind: input, shape index: {}]
  %s5 = inlined_call_operand.hbm [shape: f32[2,32,32], index: 5, kind: output, shape index: {}]
  %s6 = sld [smem:[#allocation0]]
  $region30: #{tpu_custom_call.1} parent=0
    _
  %s8 = ssub.s32 1, %s6
  %s9 = scalar_select 0, %s8, %s6
  $region1: #{tpu_custom_call.1} parent=0
    #allocation2 [shape = 'u8[32768]{0}', space=vmem, size = 0x8000, scoped, tag = 'output window, operand 0, single buffered']
    #allocation3 [shape = 's32[1]{0}', space=sflag, size = 0x4, scoped, tag = 'scoped memory for tpu_custom_call.1']
    %10 = vsyncpa [#allocation3], 0
    // Predicated region
    $region2: #{tpu_custom_call.1} parent=1 // pred_check
      _
    $region3: #{tpu_custom_call.1} parent=1 // pred_check_branch
      %12 = sbr.rel (0) target = $region5
    $region4: #{tpu_custom_call.1} parent=1 // pred_region
      _
    $region5: #{tpu_custom_call.1} parent=1 // pred_fallthru
      _
    // Predicated region
    $region6: #{tpu_custom_call.1} parent=1 // pred_check
      _
    $region7: #{tpu_custom_call.1} parent=1 // pred_check_branch
      %14 = sbr.rel (0) target = $region9
    $region8: #{tpu_custom_call.1} parent=1 // pred_region
      _
    $region9: #{tpu_custom_call.1} parent=1 // pred_fallthru
      _
    // Predicated region
    $region10: #{tpu_custom_call.1} parent=1 // pred_check
      _
    $region11: #{tpu_custom_call.1} parent=1 // pred_check_branch
      %16 = sbr.rel (0) target = $region13
    $region12: #{tpu_custom_call.1} parent=1 // pred_region
      _
    $region13: #{tpu_custom_call.1} parent=1 // pred_fallthru
      _
    // Predicated region
    $region14: #{tpu_custom_call.1} parent=1 // pred_check
      _
    $region15: #{tpu_custom_call.1} parent=1 // pred_check_branch
      %18 = sbr.rel (0) target = $region17
    $region16: #{tpu_custom_call.1} parent=1 // pred_region
      _
    $region17: #{tpu_custom_call.1} parent=1 // pred_fallthru
      _
    // Predicated region
    $region18: #{tpu_custom_call.1} parent=1 // pred_check
      _
    $region19: #{tpu_custom_call.1} parent=1 // pred_check_branch
      %20 = sbr.rel (0) target = $region21
    $region20: #{tpu_custom_call.1} parent=1 // pred_region
      _
    $region21: #{tpu_custom_call.1} parent=1 // pred_fallthru
      _
    %v22 = vld [vmem:[%s0] sm:$0xf]
    %v23 = vld [vmem:[%s0 + $0x4] sm:$0xf]
    %v24 = vld [vmem:[%s0 + $0x8] sm:$0xf]
    %v25 = vld [vmem:[%s0 + $0xc] sm:$0xf]
    %v26 = vld [vmem:[%s0 + $0x10] sm:$0xf]
    %v27 = vld [vmem:[%s0 + $0x14] sm:$0xf]
    %v28 = vld [vmem:[%s0 + $0x18] sm:$0xf]
    %v29 = vld [vmem:[%s0 + $0x1c] sm:$0xf]
    %v30 = vld [vmem:[%s2] sm:$0xf]
    %v31 = vld [vmem:[%s2 + $0x4] sm:$0xf]
    %v32 = vld [vmem:[%s2 + $0x8] sm:$0xf]
    %v33 = vld [vmem:[%s2 + $0xc] sm:$0xf]
    %v42 = vunpack.c.l.b16 %v22
    %v43 = vunpack.c.l.b16 %v23
    %v44 = vunpack.c.l.b16 %v24
    %v45 = vunpack.c.l.b16 %v25
    %v46 = vunpack.c.l.b16 %v26
    %v47 = vunpack.c.l.b16 %v27
    %v48 = vunpack.c.l.b16 %v28
    %v49 = vunpack.c.l.b16 %v29
    %v50 = vpack.c.b16 %v43, %v42
    %v51 = vpack.c.b16 %v45, %v44
    %v52 = vpack.c.b16 %v47, %v46
    %v53 = vpack.c.b16 %v49, %v48
    %v58 = vunpack.c.l.b16 %v30
    %v59 = vunpack.c.l.b16 %v31
    %v60 = vunpack.c.l.b16 %v32
    %v61 = vunpack.c.l.b16 %v33
    %v62 = vpack.c.b16 %v59, %v58
    %v63 = vpack.c.b16 %v61, %v60
    %vm66 = vcmask 261120
    %v68 = vsel %vm66, %v50, 0
    %v71 = vsel %vm66, %v51, 0
    %v74 = vsel %vm66, %v52, 0
    %v77 = vsel %vm66, %v53, 0
    %79 = vmatprep.subr.bf16.mxu0 0
    %80 = vmatpush1.bf16.msra.mxu0 0
    %81 = vmatprep.subr.bf16.mxu0 0
    %82 = vmatpush1.bf16.msra.mxu0 0
    %83 = vmatprep.subr.bf16.mxu0 0
    %84 = vmatpush1.bf16.msra.mxu0 0
    %85 = vmatprep.subr.bf16.mxu0 0
    %86 = vmatpush1.bf16.msra.mxu0 0
    %87 = vmatprep.subr.bf16.mxu0 0
    %88 = vmatpush1.bf16.msra.mxu0 0
    %89 = vmatprep.subr.bf16.mxu0 0
    %90 = vmatpush1.bf16.msra.mxu0 0
    %91 = vmatprep.subr.bf16.mxu0 0
    %92 = vmatpush1.bf16.msra.mxu0 %v63
    %93 = vmatprep.subr.bf16.mxu0 0
    %94 = vmatpush1.bf16.msra.mxu0 %v62
    %95 = vmatprep.subr.bf16.mxu0 0
    %96 = vmatpush2.bf16.msra.mxu0 0
    %97 = vmatprep.subr.bf16.mxu0 0
    %98 = vmatpush2.bf16.msra.mxu0 0
    %99 = vmatprep.subr.bf16.mxu0 0
    %100 = vmatpush2.bf16.msra.mxu0 0
    %101 = vmatprep.subr.bf16.mxu0 0
    %102 = vmatpush2.bf16.msra.mxu0 0
    %103 = vmatprep.subr.bf16.mxu0 0
    %104 = vmatpush2.bf16.msra.mxu0 0
    %105 = vmatprep.subr.bf16.mxu0 0
    %106 = vmatpush2.bf16.msra.mxu0 0
    %107 = vmatprep.subr.bf16.mxu0 0
    %108 = vmatpush2.bf16.msra.mxu0 0
    %109 = vmatprep.subr.bf16.mxu0 0
    %110 = vmatpush2.bf16.msra.mxu0 0
    %111 = vmatprep.mubr.bf16.mxu0 0
    %112 = vmatmul.mubr.bf16.gmra.mxu0 %v68
    %v113 = vpop.f32.mrf.mxu0
    %v114 = vadd.f32 0.0, %v113
    %v115 = vpop.f32.mrf.mxu0
    %v116 = vpop.f32.mrf.mxu0
    %v117 = vadd.f32 0.0, %v116
    %v118 = vpop.f32.mrf.mxu0
    %119 = vmatprep.mubr.bf16.mxu0 0
    %120 = vmatmul.mubr.bf16.gmra.mxu0 %v71
    %v121 = vpop.f32.mrf.mxu0
    %v122 = vadd.f32 0.0, %v121
    %v123 = vpop.f32.mrf.mxu0
    %v124 = vpop.f32.mrf.mxu0
    %v125 = vadd.f32 0.0, %v124
    %v126 = vpop.f32.mrf.mxu0
    %127 = vmatprep.mubr.bf16.mxu0 0
    %128 = vmatmul.mubr.bf16.gmra.mxu0 %v74
    %v129 = vpop.f32.mrf.mxu0
    %v130 = vadd.f32 0.0, %v129
    %v131 = vpop.f32.mrf.mxu0
    %v132 = vpop.f32.mrf.mxu0
    %v133 = vadd.f32 0.0, %v132
    %v134 = vpop.f32.mrf.mxu0
    %135 = vmatprep.mubr.bf16.mxu0 0
    %136 = vmatmul.mubr.bf16.gmra.mxu0 %v77
    %v137 = vpop.f32.mrf.mxu0
    %v138 = vadd.f32 0.0, %v137
    %v139 = vpop.f32.mrf.mxu0
    %v140 = vpop.f32.mrf.mxu0
    %v141 = vadd.f32 0.0, %v140
    %v142 = vpop.f32.mrf.mxu0
    %143 = vdwg.mxu0
    %v144 = vld [vmem:[%s1] sm:$0xf]
    %v145 = vld [vmem:[%s1 + $0x4] sm:$0xf]
    %v146 = vld [vmem:[%s1 + $0x8] sm:$0xf]
    %v147 = vld [vmem:[%s1 + $0xc] sm:$0xf]
    %v148 = vld [vmem:[%s1 + $0x10] sm:$0xf]
    %v149 = vld [vmem:[%s1 + $0x14] sm:$0xf]
    %v150 = vld [vmem:[%s1 + $0x18] sm:$0xf]
    %v151 = vld [vmem:[%s1 + $0x1c] sm:$0xf]
    %v152 = vld [vmem:[%s3] sm:$0xf]
    %v153 = vld [vmem:[%s3 + $0x4] sm:$0xf]
    %v154 = vld [vmem:[%s3 + $0x8] sm:$0xf]
    %v155 = vld [vmem:[%s3 + $0xc] sm:$0xf]
    %v164 = vunpack.c.l.b16 %v144
    %v165 = vunpack.c.l.b16 %v145
    %v166 = vunpack.c.l.b16 %v146
    %v167 = vunpack.c.l.b16 %v147
    %v168 = vunpack.c.l.b16 %v148
    %v169 = vunpack.c.l.b16 %v149
    %v170 = vunpack.c.l.b16 %v150
    %v171 = vunpack.c.l.b16 %v151
    %v172 = vpack.c.b16 %v165, %v164
    %v173 = vpack.c.b16 %v167, %v166
    %v174 = vpack.c.b16 %v169, %v168
    %v175 = vpack.c.b16 %v171, %v170
    %v180 = vunpack.c.l.b16 %v152
    %v181 = vunpack.c.l.b16 %v153
    %v182 = vunpack.c.l.b16 %v154
    %v183 = vunpack.c.l.b16 %v155
    %v184 = vpack.c.b16 %v181, %v180
    %v185 = vpack.c.b16 %v183, %v182
    %v189 = vsel %vm66, %v172, 0
    %v192 = vsel %vm66, %v173, 0
    %v195 = vsel %vm66, %v174, 0
    %v198 = vsel %vm66, %v175, 0
    %200 = vmatprep.subr.bf16.mxu0 0
    %201 = vmatpush1.bf16.msra.mxu0 0
    %202 = vmatprep.subr.bf16.mxu0 0
    %203 = vmatpush1.bf16.msra.mxu0 0
    %204 = vmatprep.subr.bf16.mxu0 0
    %205 = vmatpush1.bf16.msra.mxu0 0
    %206 = vmatprep.subr.bf16.mxu0 0
    %207 = vmatpush1.bf16.msra.mxu0 0
    %208 = vmatprep.subr.bf16.mxu0 0
    %209 = vmatpush1.bf16.msra.mxu0 0
    %210 = vmatprep.subr.bf16.mxu0 0
    %211 = vmatpush1.bf16.msra.mxu0 0
    %212 = vmatprep.subr.bf16.mxu0 0
    %213 = vmatpush1.bf16.msra.mxu0 %v185
    %214 = vmatprep.subr.bf16.mxu0 0
    %215 = vmatpush1.bf16.msra.mxu0 %v184
    %216 = vmatprep.subr.bf16.mxu0 0
    %217 = vmatpush2.bf16.msra.mxu0 0
    %218 = vmatprep.subr.bf16.mxu0 0
    %219 = vmatpush2.bf16.msra.mxu0 0
    %220 = vmatprep.subr.bf16.mxu0 0
    %221 = vmatpush2.bf16.msra.mxu0 0
    %222 = vmatprep.subr.bf16.mxu0 0
    %223 = vmatpush2.bf16.msra.mxu0 0
    %224 = vmatprep.subr.bf16.mxu0 0
    %225 = vmatpush2.bf16.msra.mxu0 0
    %226 = vmatprep.subr.bf16.mxu0 0
    %227 = vmatpush2.bf16.msra.mxu0 0
    %228 = vmatprep.subr.bf16.mxu0 0
    %229 = vmatpush2.bf16.msra.mxu0 0
    %230 = vmatprep.subr.bf16.mxu0 0
    %231 = vmatpush2.bf16.msra.mxu0 0
    %232 = vmatprep.mubr.bf16.mxu0 0
    %233 = vmatmul.mubr.bf16.gmra.mxu0 %v189
    %v234 = vpop.f32.mrf.mxu0
    %v235 = vadd.f32 0.0, %v234
    %v236 = vpop.f32.mrf.mxu0
    %v237 = vpop.f32.mrf.mxu0
    %v238 = vadd.f32 0.0, %v237
    %v239 = vpop.f32.mrf.mxu0
    %240 = vmatprep.mubr.bf16.mxu0 0
    %241 = vmatmul.mubr.bf16.gmra.mxu0 %v192
    %v242 = vpop.f32.mrf.mxu0
    %v243 = vadd.f32 0.0, %v242
    %v244 = vpop.f32.mrf.mxu0
    %v245 = vpop.f32.mrf.mxu0
    %v246 = vadd.f32 0.0, %v245
    %v247 = vpop.f32.mrf.mxu0
    %248 = vmatprep.mubr.bf16.mxu0 0
    %249 = vmatmul.mubr.bf16.gmra.mxu0 %v195
    %v250 = vpop.f32.mrf.mxu0
    %v251 = vadd.f32 0.0, %v250
    %v252 = vpop.f32.mrf.mxu0
    %v253 = vpop.f32.mrf.mxu0
    %v254 = vadd.f32 0.0, %v253
    %v255 = vpop.f32.mrf.mxu0
    %256 = vmatprep.mubr.bf16.mxu0 0
    %257 = vmatmul.mubr.bf16.gmra.mxu0 %v198
    %v258 = vpop.f32.mrf.mxu0
    %v259 = vadd.f32 0.0, %v258
    %v260 = vpop.f32.mrf.mxu0
    %v261 = vpop.f32.mrf.mxu0
    %v262 = vadd.f32 0.0, %v261
    %v263 = vpop.f32.mrf.mxu0
    %264 = vdwg.mxu0
    %v265 = vpack.c.bf16 %v117, %v114
    %v266 = vpack.c.bf16 %v125, %v122
    %v267 = vpack.c.bf16 %v238, %v235
    %v268 = vpack.c.bf16 %v246, %v243
    %v270 = vsel %vm66, %v265, 0
    %v273 = vsel %vm66, %v266, 0
    %v276 = vsel %vm66, %v267, 0
    %v279 = vsel %vm66, %v268, 0
    %281 = vmatprep.subr.bf16.mxu0 0
    %282 = vmatpush1.bf16.xpose.msra.mxu0 0
    %283 = vmatprep.subr.bf16.mxu0 0
    %284 = vmatpush1.bf16.xpose.msra.mxu0 0
    %285 = vmatprep.subr.bf16.mxu0 0
    %286 = vmatpush1.bf16.xpose.msra.mxu0 0
    %287 = vmatprep.subr.bf16.mxu0 0
    %288 = vmatpush1.bf16.xpose.msra.mxu0 0
    %289 = vmatprep.subr.bf16.mxu0 0
    %290 = vmatpush1.bf16.xpose.msra.mxu0 0
    %291 = vmatprep.subr.bf16.mxu0 0
    %292 = vmatpush1.bf16.xpose.msra.mxu0 0
    %293 = vmatprep.subr.bf16.mxu0 0
    %294 = vmatpush1.bf16.xpose.msra.mxu0 %v279
    %295 = vmatprep.subr.bf16.mxu0 0
    %296 = vmatpush1.bf16.xpose.msra.mxu0 %v276
    %297 = vmatprep.subr.bf16.mxu0 0
    %298 = vmatpush2.bf16.xpose.msra.mxu0 0
    %299 = vmatprep.subr.bf16.mxu0 0
    %300 = vmatpush2.bf16.xpose.msra.mxu0 0
    %301 = vmatprep.subr.bf16.mxu0 0
    %302 = vmatpush2.bf16.xpose.msra.mxu0 0
    %303 = vmatprep.subr.bf16.mxu0 0
    %304 = vmatpush2.bf16.xpose.msra.mxu0 0
    %305 = vmatprep.subr.bf16.mxu0 0
    %306 = vmatpush2.bf16.xpose.msra.mxu0 0
    %307 = vmatprep.subr.bf16.mxu0 0
    %308 = vmatpush2.bf16.xpose.msra.mxu0 0
    %309 = vmatprep.subr.bf16.mxu0 0
    %310 = vmatpush2.bf16.xpose.msra.mxu0 0
    %311 = vmatprep.subr.bf16.mxu0 0
    %312 = vmatpush2.bf16.xpose.msra.mxu0 0
    %313 = vmatprep.mubr.bf16.mxu0 0
    %314 = vmatmul.mubr.bf16.gmra.mxu0 %v270
    %v315 = vpop.f32.mrf.mxu0
    %v316 = vadd.f32 0.0, %v315
    %v317 = vpop.f32.mrf.mxu0
    %v318 = vpop.f32.mrf.mxu0
    %v319 = vadd.f32 0.0, %v318
    %v320 = vpop.f32.mrf.mxu0
    %321 = vmatprep.mubr.bf16.mxu0 0
    %322 = vmatmul.mubr.bf16.gmra.mxu0 %v273
    %v323 = vpop.f32.mrf.mxu0
    %v324 = vadd.f32 0.0, %v323
    %v325 = vpop.f32.mrf.mxu0
    %v326 = vpop.f32.mrf.mxu0
    %v327 = vadd.f32 0.0, %v326
    %v328 = vpop.f32.mrf.mxu0
    %329 = vdwg.mxu0
    %v330 = vsel %vm66, %v316, -inf
    %331 = vmax.xlane.f32.xlu0 %v330
    %v332 = vpop.xlane.xlu0 %331
    %v333 = vsel %vm66, %v319, -inf
    %334 = vmax.xlane.f32.xlu0 %v333
    %v335 = vpop.xlane.xlu0 %334
    %v336 = vsel %vm66, %v324, -inf
    %337 = vmax.xlane.f32.xlu0 %v336
    %v338 = vpop.xlane.xlu0 %337
    %v339 = vsel %vm66, %v327, -inf
    %340 = vmax.xlane.f32.xlu0 %v339
    %v341 = vpop.xlane.xlu0 %340
    %v342 = vsub.f32 %v316, %v332
    %v343 = vsub.f32 %v319, %v335
    %v344 = vsub.f32 %v324, %v338
    %v345 = vsub.f32 %v327, %v341
    %v346 = vmul.f32 %v342, 1.442695
    %v347 = vpow.pop %v346
    %v348 = vmul.f32 %v343, 1.442695
    %v349 = vpow.pop %v348
    %v350 = vmul.f32 %v344, 1.442695
    %v351 = vpow.pop %v350
    %v352 = vmul.f32 %v345, 1.442695
    %v353 = vpow.pop %v352
    %v354 = vsel %vm66, %v347, 0.0
    %355 = vadd.xlane.f32.xlu0 %v354
    %v356 = vpop.xlane.xlu0 %355
    %v357 = vsel %vm66, %v349, 0.0
    %358 = vadd.xlane.f32.xlu0 %v357
    %v359 = vpop.xlane.xlu0 %358
    %v360 = vsel %vm66, %v351, 0.0
    %361 = vadd.xlane.f32.xlu0 %v360
    %v362 = vpop.xlane.xlu0 %361
    %v363 = vsel %vm66, %v353, 0.0
    %364 = vadd.xlane.f32.xlu0 %v363
    %v365 = vpop.xlane.xlu0 %364
    %v366 = vrcp.pop %v356
    %v367 = vmul.f32 %v347, %v366
    %v368 = vrcp.pop %v359
    %v369 = vmul.f32 %v349, %v368
    %v370 = vrcp.pop %v362
    %v371 = vmul.f32 %v351, %v370
    %v372 = vrcp.pop %v365
    %v373 = vmul.f32 %v353, %v372
    %v374 = vpack.c.bf16 %v369, %v367
    %v375 = vpack.c.bf16 %v373, %v371
    %376 = vmatprep.subr.bf16.mxu0 0
    %377 = vmatpush1.bf16.msra.mxu0 0
    %378 = vmatprep.subr.bf16.mxu0 0
    %379 = vmatpush1.bf16.msra.mxu0 0
    %380 = vmatprep.subr.bf16.mxu0 0
    %381 = vmatpush1.bf16.msra.mxu0 0
    %382 = vmatprep.subr.bf16.mxu0 0
    %383 = vmatpush1.bf16.msra.mxu0 0
    %384 = vmatprep.subr.bf16.mxu0 0
    %385 = vmatpush1.bf16.msra.mxu0 0
    %386 = vmatprep.subr.bf16.mxu0 0
    %387 = vmatpush1.bf16.msra.mxu0 0
    %388 = vmatprep.subr.bf16.mxu0 0
    %389 = vmatpush1.bf16.msra.mxu0 %v375
    %390 = vmatprep.subr.bf16.mxu0 0
    %391 = vmatpush1.bf16.msra.mxu0 %v374
    %392 = vmatprep.subr.bf16.mxu0 0
    %393 = vmatpush2.bf16.msra.mxu0 0
    %394 = vmatprep.subr.bf16.mxu0 0
    %395 = vmatpush2.bf16.msra.mxu0 0
    %396 = vmatprep.subr.bf16.mxu0 0
    %397 = vmatpush2.bf16.msra.mxu0 0
    %398 = vmatprep.subr.bf16.mxu0 0
    %399 = vmatpush2.bf16.msra.mxu0 0
    %400 = vmatprep.subr.bf16.mxu0 0
    %401 = vmatpush2.bf16.msra.mxu0 0
    %402 = vmatprep.subr.bf16.mxu0 0
    %403 = vmatpush2.bf16.msra.mxu0 0
    %404 = vmatprep.subr.bf16.mxu0 0
    %405 = vmatpush2.bf16.msra.mxu0 0
    %406 = vmatprep.subr.bf16.mxu0 0
    %407 = vmatpush2.bf16.msra.mxu0 0
    %408 = vmatprep.mubr.bf16.mxu0 0
    %409 = vmatmul.mubr.bf16.gmra.mxu0 %v276
    %v410 = vpop.f32.mrf.mxu0
    %v411 = vadd.f32 0.0, %v410
    %v412 = vpop.f32.mrf.mxu0
    %v413 = vpop.f32.mrf.mxu0
    %v414 = vadd.f32 0.0, %v413
    %v415 = vpop.f32.mrf.mxu0
    %416 = vmatprep.mubr.bf16.mxu0 0
    %417 = vmatmul.mubr.bf16.gmra.mxu0 %v279
    %v418 = vpop.f32.mrf.mxu0
    %v419 = vadd.f32 0.0, %v418
    %v420 = vpop.f32.mrf.mxu0
    %v421 = vpop.f32.mrf.mxu0
    %v422 = vadd.f32 0.0, %v421
    %v423 = vpop.f32.mrf.mxu0
    %424 = vdwg.mxu0
    %425 = vst.msk [vmem:[#allocation2] sm:$0xff] %vm66, %v411
    %426 = vst.msk [vmem:[#allocation2 + $0x8] sm:$0xff] %vm66, %v414
    %427 = vst.msk [vmem:[#allocation2 + $0x10] sm:$0xff] %vm66, %v419
    %428 = vst.msk [vmem:[#allocation2 + $0x18] sm:$0xff] %vm66, %v422
    %v429 = vpack.c.bf16 %v133, %v130
    %v430 = vpack.c.bf16 %v141, %v138
    %v431 = vpack.c.bf16 %v254, %v251
    %v432 = vpack.c.bf16 %v262, %v259
    %v434 = vsel %vm66, %v429, 0
    %v437 = vsel %vm66, %v430, 0
    %v440 = vsel %vm66, %v431, 0
    %v443 = vsel %vm66, %v432, 0
    %445 = vmatprep.subr.bf16.mxu0 0
    %446 = vmatpush1.bf16.xpose.msra.mxu0 0
    %447 = vmatprep.subr.bf16.mxu0 0
    %448 = vmatpush1.bf16.xpose.msra.mxu0 0
    %449 = vmatprep.subr.bf16.mxu0 0
    %450 = vmatpush1.bf16.xpose.msra.mxu0 0
    %451 = vmatprep.subr.bf16.mxu0 0
    %452 = vmatpush1.bf16.xpose.msra.mxu0 0
    %453 = vmatprep.subr.bf16.mxu0 0
    %454 = vmatpush1.bf16.xpose.msra.mxu0 0
    %455 = vmatprep.subr.bf16.mxu0 0
    %456 = vmatpush1.bf16.xpose.msra.mxu0 0
    %457 = vmatprep.subr.bf16.mxu0 0
    %458 = vmatpush1.bf16.xpose.msra.mxu0 %v443
    %459 = vmatprep.subr.bf16.mxu0 0
    %460 = vmatpush1.bf16.xpose.msra.mxu0 %v440
    %461 = vmatprep.subr.bf16.mxu0 0
    %462 = vmatpush2.bf16.xpose.msra.mxu0 0
    %463 = vmatprep.subr.bf16.mxu0 0
    %464 = vmatpush2.bf16.xpose.msra.mxu0 0
    %465 = vmatprep.subr.bf16.mxu0 0
    %466 = vmatpush2.bf16.xpose.msra.mxu0 0
    %467 = vmatprep.subr.bf16.mxu0 0
    %468 = vmatpush2.bf16.xpose.msra.mxu0 0
    %469 = vmatprep.subr.bf16.mxu0 0
    %470 = vmatpush2.bf16.xpose.msra.mxu0 0
    %471 = vmatprep.subr.bf16.mxu0 0
    %472 = vmatpush2.bf16.xpose.msra.mxu0 0
    %473 = vmatprep.subr.bf16.mxu0 0
    %474 = vmatpush2.bf16.xpose.msra.mxu0 0
    %475 = vmatprep.subr.bf16.mxu0 0
    %476 = vmatpush2.bf16.xpose.msra.mxu0 0
    %477 = vmatprep.mubr.bf16.mxu0 0
    %478 = vmatmul.mubr.bf16.gmra.mxu0 %v434
    %v479 = vpop.f32.mrf.mxu0
    %v480 = vadd.f32 0.0, %v479
    %v481 = vpop.f32.mrf.mxu0
    %v482 = vpop.f32.mrf.mxu0
    %v483 = vadd.f32 0.0, %v482
    %v484 = vpop.f32.mrf.mxu0
    %485 = vmatprep.mubr.bf16.mxu0 0
    %486 = vmatmul.mubr.bf16.gmra.mxu0 %v437
    %v487 = vpop.f32.mrf.mxu0
    %v488 = vadd.f32 0.0, %v487
    %v489 = vpop.f32.mrf.mxu0
    %v490 = vpop.f32.mrf.mxu0
    %v491 = vadd.f32 0.0, %v490
    %v492 = vpop.f32.mrf.mxu0
    %493 = vdwg.mxu0
    %v494 = vsel %vm66, %v480, -inf
    %495 = vmax.xlane.f32.xlu0 %v494
    %v496 = vpop.xlane.xlu0 %495
    %v497 = vsel %vm66, %v483, -inf
    %498 = vmax.xlane.f32.xlu0 %v497
    %v499 = vpop.xlane.xlu0 %498
    %v500 = vsel %vm66, %v488, -inf
    %501 = vmax.xlane.f32.xlu0 %v500
    %v502 = vpop.xlane.xlu0 %501
    %v503 = vsel %vm66, %v491, -inf
    %504 = vmax.xlane.f32.xlu0 %v503
    %v505 = vpop.xlane.xlu0 %504
    %v506 = vsub.f32 %v480, %v496
    %v507 = vsub.f32 %v483, %v499
    %v508 = vsub.f32 %v488, %v502
    %v509 = vsub.f32 %v491, %v505
    %v510 = vmul.f32 %v506, 1.442695
    %v511 = vpow.pop %v510
    %v512 = vmul.f32 %v507, 1.442695
    %v513 = vpow.pop %v512
    %v514 = vmul.f32 %v508, 1.442695
    %v515 = vpow.pop %v514
    %v516 = vmul.f32 %v509, 1.442695
    %v517 = vpow.pop %v516
    %v518 = vsel %vm66, %v511, 0.0
    %519 = vadd.xlane.f32.xlu0 %v518
    %v520 = vpop.xlane.xlu0 %519
    %v521 = vsel %vm66, %v513, 0.0
    %522 = vadd.xlane.f32.xlu0 %v521
    %v523 = vpop.xlane.xlu0 %522
    %v524 = vsel %vm66, %v515, 0.0
    %525 = vadd.xlane.f32.xlu0 %v524
    %v526 = vpop.xlane.xlu0 %525
    %v527 = vsel %vm66, %v517, 0.0
    %528 = vadd.xlane.f32.xlu0 %v527
    %v529 = vpop.xlane.xlu0 %528
    %v530 = vrcp.pop %v520
    %v531 = vmul.f32 %v511, %v530
    %v532 = vrcp.pop %v523
    %v533 = vmul.f32 %v513, %v532
    %v534 = vrcp.pop %v526
    %v535 = vmul.f32 %v515, %v534
    %v536 = vrcp.pop %v529
    %v537 = vmul.f32 %v517, %v536
    %v538 = vpack.c.bf16 %v533, %v531
    %v539 = vpack.c.bf16 %v537, %v535
    %540 = vmatprep.subr.bf16.mxu0 0
    %541 = vmatpush1.bf16.msra.mxu0 0
    %542 = vmatprep.subr.bf16.mxu0 0
    %543 = vmatpush1.bf16.msra.mxu0 0
    %544 = vmatprep.subr.bf16.mxu0 0
    %545 = vmatpush1.bf16.msra.mxu0 0
    %546 = vmatprep.subr.bf16.mxu0 0
    %547 = vmatpush1.bf16.msra.mxu0 0
    %548 = vmatprep.subr.bf16.mxu0 0
    %549 = vmatpush1.bf16.msra.mxu0 0
    %550 = vmatprep.subr.bf16.mxu0 0
    %551 = vmatpush1.bf16.msra.mxu0 0
    %552 = vmatprep.subr.bf16.mxu0 0
    %553 = vmatpush1.bf16.msra.mxu0 %v539
    %554 = vmatprep.subr.bf16.mxu0 0
    %555 = vmatpush1.bf16.msra.mxu0 %v538
    %556 = vmatprep.subr.bf16.mxu0 0
    %557 = vmatpush2.bf16.msra.mxu0 0
    %558 = vmatprep.subr.bf16.mxu0 0
    %559 = vmatpush2.bf16.msra.mxu0 0
    %560 = vmatprep.subr.bf16.mxu0 0
    %561 = vmatpush2.bf16.msra.mxu0 0
    %562 = vmatprep.subr.bf16.mxu0 0
    %563 = vmatpush2.bf16.msra.mxu0 0
    %564 = vmatprep.subr.bf16.mxu0 0
    %565 = vmatpush2.bf16.msra.mxu0 0
    %566 = vmatprep.subr.bf16.mxu0 0
    %567 = vmatpush2.bf16.msra.mxu0 0
    %568 = vmatprep.subr.bf16.mxu0 0
    %569 = vmatpush2.bf16.msra.mxu0 0
    %570 = vmatprep.subr.bf16.mxu0 0
    %571 = vmatpush2.bf16.msra.mxu0 0
    %572 = vmatprep.mubr.bf16.mxu0 0
    %573 = vmatmul.mubr.bf16.gmra.mxu0 %v440
    %v574 = vpop.f32.mrf.mxu0
    %v575 = vadd.f32 0.0, %v574
    %v576 = vpop.f32.mrf.mxu0
    %v577 = vpop.f32.mrf.mxu0
    %v578 = vadd.f32 0.0, %v577
    %v579 = vpop.f32.mrf.mxu0
    %580 = vmatprep.mubr.bf16.mxu0 0
    %581 = vmatmul.mubr.bf16.gmra.mxu0 %v443
    %v582 = vpop.f32.mrf.mxu0
    %v583 = vadd.f32 0.0, %v582
    %v584 = vpop.f32.mrf.mxu0
    %v585 = vpop.f32.mrf.mxu0
    %v586 = vadd.f32 0.0, %v585
    %v587 = vpop.f32.mrf.mxu0
    %588 = vdwg.mxu0
    %s589 = scalar_lea.vmem [#allocation2], 32
    %590 = vst.msk [vmem:[%s589] sm:$0xff] %vm66, %v575
    %591 = vst.msk [vmem:[%s589 + $0x8] sm:$0xff] %vm66, %v578
    %592 = vst.msk [vmem:[%s589 + $0x10] sm:$0xff] %vm66, %v583
    %593 = vst.msk [vmem:[%s589 + $0x18] sm:$0xff] %vm66, %v586
    // Predicated region
    $region22: #{tpu_custom_call.1} parent=1 // pred_check
      _
    $region23: #{tpu_custom_call.1} parent=1 // pred_check_branch
      %595 = sbr.rel (0) target = $region25
    $region24: #{tpu_custom_call.1} parent=1 // pred_region
      %s597 = ssub.s32 1024, 1024
      %598 = vsyncadd [#allocation3], %s597
      %s599 = sshll.u32 [#allocation2], 4
      %s600 = int_to_ptr.vmem [resolvable:$true] %s599
      %605 = dma.vmem_to_hbm [thread:$0]  %s600, 1024, %s5, [#allocation3], 128, 128, 8
    $region25: #{tpu_custom_call.1} parent=1 // pred_fallthru
      _
    // Predicated region
    $region26: #{tpu_custom_call.1} parent=1 // pred_check
      _
    $region27: #{tpu_custom_call.1} parent=1 // pred_check_branch
      %607 = sbr.rel (0) target = $region29
    $region28: #{tpu_custom_call.1} parent=1 // pred_region
      %608 = dma.done [#allocation3], 1024
    $region29: #{tpu_custom_call.1} parent=1 // pred_fallthru
      _
    %609 = vsyncpa [#allocation3], 1

</llo_original>
